<compile_context>
chip_gen: v6e
topology: v6e:2x2x1
jax: 0.10.0
libtpu: 0.0.40
codegen_flags: <defaults>
</compile_context>

<pallas_src>
import functools
import math

import jax
import jax.numpy as jnp
from jax import lax
from jax.experimental import pallas as pl
from jax.experimental.pallas import tpu as pltpu

EPS = 1e-10
LANE = 128


def _watson_fft_kernel(scal_ref, tgt_ref, inp_ref, dftT_ref, out_ref, *,
                       nk, tile, num_tiles, nfreq, bh, alpha, w):
    i = pl.program_id(0)

    # One MXU matmul per image: (2*nfreq, 64) @ (64, tile) -> (2*nfreq, tile).
    # Rows 0:nfreq are the real parts, nfreq:2*nfreq the imaginary parts of
    # rfft2(block)/64.  Block index runs along the lane axis (lane-dense).
    dftT = dftT_ref[...]
    y0 = jnp.dot(dftT, tgt_ref[...], preferred_element_type=jnp.float32)
    y1 = jnp.dot(dftT, inp_ref[...], preferred_element_type=jnp.float32)

    re0, im0 = y0[:nfreq, :], y0[nfreq:, :]
    re1, im1 = y1[:nfreq, :], y1[nfreq:, :]

    # amplitude: torch.norm(c + EPS, dim=-1) adds EPS to both re and im
    amp0 = jnp.sqrt((re0 + EPS) ** 2 + (im0 + EPS) ** 2)      # (nfreq, tile)
    amp1 = jnp.sqrt((re1 + EPS) ** 2 + (im1 + EPS) ** 2)

    # luminance masking, one shared log.  log_c_lum = -alpha*log(avg_lum+EPS)
    # (wrapper-computed), so  t_l = exp(alpha*log(dc+EPS) + log_c_lum).
    log_c_lum = scal_ref[0]
    log_amp0 = jnp.log(amp0 + EPS)                             # (nfreq, tile)
    g = alpha * log_amp0[0:1, :] + log_c_lum                   # (1, tile)
    t_l = jnp.exp(g)
    t_l_pw = jnp.exp((1.0 - w) * g)
    b_mask = jnp.exp(w * log_amp0) * t_l_pw                    # (nfreq, tile)

    # two-term softmax s = (t_l*e^t_l + b*e^b)/(e^t_l+e^b); single exp:
    #   e = exp(min-max);  1/s = (1+e)/(max + min*e);  fold 1/s into watson.
    mx = jnp.maximum(t_l, b_mask)
    mn = jnp.minimum(t_l, b_mask)
    e = jnp.exp(mn - mx)
    # beta == 1: (|x|+EPS)**beta + EPS == |x| + 2*EPS
    watson = (jnp.abs(amp0 - amp1) * (1.0 + e)
              * pl.reciprocal(mx + mn * e, approx=True) + 2.0 * EPS)

    # phase distance: acos(cos(p0-p1) * (1 - 1e3*EPS)) * w_phase
    #   cos(atan2(im0,x0)-atan2(im1,x1)) = (x0*x1+im0*im1)/(r0*r1); reuse
    #   amp0*amp1 ~= r0*r1 (EPS-level difference) with a clamp so flat/zero
    #   blocks cannot underflow to 0 and produce NaN.
    x0 = re0 + EPS
    x1 = re1 + EPS
    denom = jnp.maximum(amp0 * amp1, 1e-30)
    z = (x0 * x1 + im0 * im1) * pl.reciprocal(denom, approx=True)
    z = jnp.clip(z * (1.0 - EPS * 1e3), -1.0, 1.0)
    # acos via minimax poly (Abramowitz & Stegun 4.4.45, |err| < 7e-5):
    az = jnp.abs(z)
    p = jnp.sqrt(1.0 - az) * (
        1.5707288 + az * (-0.2121144 + az * (0.0742610 - 0.0187293 * az)))
    acos_z = jnp.where(z >= 0.0, p, math.pi - p)

    # w_phase = exp(-2) with the four purely-real corner coefficients zeroed;
    # rebuilt in-kernel from an iota (no pipelined VMEM stream needed).
    row = lax.broadcasted_iota(jnp.int32, (nfreq, 1), 0)
    corner = ((row == 0) | (row == bh - 1)
              | (row == (bh - 1) * bh) | (row == (bh - 1) * bh + bh - 1))
    wph = jnp.where(corner, 0.0, math.exp(-2.0)).astype(jnp.float32)

    total = watson + acos_z * wph                              # (nfreq, tile)

    # beta==1 collapses the per-sample reduction to one global sum; emit a
    # per-tile scalar.  Padded block columns only exist on the last tile.
    valid_last = nk - (num_tiles - 1) * tile
    if valid_last < tile:
        last = num_tiles - 1

        @pl.when(i == last)
        def _():
            col = lax.broadcasted_iota(jnp.int32, (1, tile), 1)
            out_ref[0, 0] = jnp.sum(jnp.where(col < valid_last, total, 0.0))

        @pl.when(i != last)
        def _():
            out_ref[0, 0] = jnp.sum(total)
    else:
        out_ref[0, 0] = jnp.sum(total)


def make_params(blocksize=8):
    """Deterministic parameter init matching WatsonDistanceFft.__init__ (trainable=False)."""
    b = blocksize
    bh = b // 2 + 1
    t_mat = jnp.exp(jnp.zeros((b, bh), jnp.float32))            # t = exp(t_tild)
    alpha = 0.1
    w = 1.0 / (1.0 + math.exp(-math.log(0.2 / 0.8)))            # sigmoid(w_tild) == 0.2
    beta = 1.0
    wph = jnp.exp(jnp.zeros((b, bh), jnp.float32) - 2.0)        # exp(w_phase_tild)
    wph = wph.at[0, 0].set(0.0)
    wph = wph.at[0, bh - 1].set(0.0)
    wph = wph.at[bh - 1, bh - 1].set(0.0)
    wph = wph.at[bh - 1, 0].set(0.0)
    return t_mat, alpha, w, beta, wph


def _rdft_matrix(b):
    """(2*nfreq, b*b) real-DFT basis: y = W @ x_flat gives re/im of rfft2(x)/b^2."""
    bh = b // 2 + 1
    u = jnp.arange(b, dtype=jnp.float32)[:, None, None, None]
    v = jnp.arange(bh, dtype=jnp.float32)[None, :, None, None]
    h = jnp.arange(b, dtype=jnp.float32)[None, None, :, None]
    ww = jnp.arange(b, dtype=jnp.float32)[None, None, None, :]
    ang = (2.0 * math.pi / b) * (u * h + v * ww)                 # (b, bh, b, b)
    nfreq = b * bh
    cos_m = jnp.cos(ang).reshape(nfreq, b * b)
    sin_m = -jnp.sin(ang).reshape(nfreq, b * b)
    return jnp.concatenate([cos_m, sin_m], axis=0) / float(b * b)


def _round_up(x, m):
    return ((x + m - 1) // m) * m


def watson_distance_fft(input_img, target_img, blocksize=8, tile_nk=2048):
    """Forward pass of WatsonDistanceFft (reduction='sum'). Inputs are NCHW, C==1."""
    N, C, H, W = input_img.shape
    assert C == 1, "FFT Watson loss is only defined for a single channel"
    b = blocksize
    bh = b // 2 + 1
    nfreq = b * bh
    assert H % b == 0 and W % b == 0
    nk = N * (H // b) * (W // b)

    def to_cols(x):  # nn.Unfold(kernel=stride=b) -> (b*b, nk), pixel index h*b+w on sublanes
        x = x.astype(jnp.float32).reshape(N, H // b, b, W // b, b)
        x = jnp.transpose(x, (0, 1, 3, 2, 4))
        return x.reshape(nk, b * b).T
    # TODO(synk): this unfold+transpose is an extra HBM read+write pass over
    #             both images; for large images move it on-chip (read (b, W)
    #             strips via BlockSpec, row-then-column 1-D DFT as two matmuls).

    tgt_T = to_cols(target_img)
    inp_T = to_cols(input_img)

    t_mat, alpha, w, beta, wph = make_params(b)
    # kernel hard-codes the trainable=False init; guard every folded assumption
    assert beta == 1.0
    assert float(jnp.max(jnp.abs(t_mat - 1.0))) == 0.0          # t == 1 folded away
    del wph                                                      # rebuilt in-kernel

    # Global luminance (only cross-block coupling): DC of rfft2/b^2 is the block
    # mean, so avg_lum is computed exactly here and folded into one SMEM scalar.
    block_mean = jnp.mean(tgt_T, axis=0)
    avg_lum = jnp.mean(jnp.sqrt((block_mean + EPS) ** 2 + EPS ** 2))
    log_c_lum = (-float(alpha)) * jnp.log(avg_lum + EPS)
    scal = jnp.reshape(log_c_lum, (1,)).astype(jnp.float32)

    dftT = _rdft_matrix(b).astype(jnp.float32)                   # (2*nfreq, 64)
    # TODO(synk): for HBM-bound deployments cast dftT and the image slabs to
    #             bf16 (keep f32 accumulation); kept f32 here for accuracy headroom.

    # Tile the block axis (lane axis).  Big tiles amortize per-step overhead;
    # keep >= 2 tiles when possible so both v7x TensorCores get work, and cap
    # the tile so double-buffered inputs + live (nfreq, tile) f32 temporaries
    # stay well inside the 32 MiB scoped-VMEM default on every generation.
    nk_l = _round_up(nk, LANE)
    if nk_l <= LANE:
        tile = LANE
    else:
        tile = min(_round_up(tile_nk, LANE), _round_up((nk_l + 1) // 2, LANE))
        tile = max(tile, LANE)
    nk_pad = _round_up(nk_l, tile)
    num_tiles = nk_pad // tile
    if nk_pad > nk:
        tgt_T = jnp.pad(tgt_T, ((0, 0), (0, nk_pad - nk)))
        inp_T = jnp.pad(inp_T, ((0, 0), (0, nk_pad - nk)))

    kernel = functools.partial(
        _watson_fft_kernel, nk=nk, tile=tile, num_tiles=num_tiles,
        nfreq=nfreq, bh=bh, alpha=float(alpha), w=float(w))

    out = pl.pallas_call(
        kernel,
        out_shape=jax.ShapeDtypeStruct((num_tiles, 1), jnp.float32),
        grid_spec=pltpu.PrefetchScalarGridSpec(
            num_scalar_prefetch=0,
            grid=(num_tiles,),
            in_specs=[
                pl.BlockSpec(memory_space=pltpu.MemorySpace.SMEM),     # log_c_lum
                pl.BlockSpec((b * b, tile), lambda i: (0, i)),         # target blocks
                pl.BlockSpec((b * b, tile), lambda i: (0, i)),         # input blocks
                pl.BlockSpec((2 * nfreq, b * b), lambda i: (0, 0)),    # DFT basis (const)
            ],
            out_specs=pl.BlockSpec((1, 1), lambda i: (i, 0),
                                   memory_space=pltpu.MemorySpace.SMEM),
        ),
        compiler_params=pltpu.CompilerParams(
            dimension_semantics=("parallel",)),
    )(scal, tgt_T, inp_T, dftT)

    # finish the reduction over per-tile partial sums
    return jnp.sum(out)


def watson_distance_fft_ref(input_img, target_img, blocksize=8):
    """Pure-JAX reference (uses jnp.fft.rfft2) for a sanity check."""
    N, C, H, W = input_img.shape
    b = blocksize
    k = (H // b) * (W // b)
    t_mat, alpha, w, beta, wph = make_params(b)

    def to_blocks(x):
        x = x.astype(jnp.float32).reshape(N, H // b, b, W // b, b)
        x = jnp.transpose(x, (0, 1, 3, 2, 4))
        return x.reshape(N, k, b, b)

    c0 = jnp.fft.rfft2(to_blocks(target_img)) / (b * b)
    c1 = jnp.fft.rfft2(to_blocks(input_img)) / (b * b)
    re0, im0 = jnp.real(c0), jnp.imag(c0)
    re1, im1 = jnp.real(c1), jnp.imag(c1)
    c0_amp = jnp.sqrt((re0 + EPS) ** 2 + (im0 + EPS) ** 2)
    c1_amp = jnp.sqrt((re1 + EPS) ** 2 + (im1 + EPS) ** 2)
    avg_lum = jnp.mean(c0_amp[:, :, 0, 0])
    t_l = t_mat[None, None] * ((c0_amp[:, :, 0:1, 0:1] + EPS) / (avg_lum + EPS)) ** alpha
    b_mask = (jnp.abs(c0_amp) + EPS) ** w * t_l ** (1.0 - w)
    sm = jax.nn.softmax(jnp.stack([t_l, b_mask], axis=-1), axis=-1)
    s = t_l * sm[..., 0] + b_mask * sm[..., 1]
    watson = (jnp.abs((c0_amp - c1_amp) / s) + EPS) ** beta + EPS
    watson = jnp.sum(watson, axis=(1, 2, 3)) ** (1.0 / beta)
    p0 = jnp.arctan2(im0, re0 + EPS)
    p1 = jnp.arctan2(im1, re1 + EPS)
    pd = jnp.arccos(jnp.cos(p0 - p1) * (1.0 - EPS * 1e3)) * wph[None, None]
    pd = jnp.sum(pd, axis=(1, 2, 3))
    return jnp.sum(watson + pd)


if __name__ == "__main__":
    key = jax.random.PRNGKey(0)
    k_in, k_tgt = jax.random.split(key)
    N, C, H, W = 2, 1, 16, 16            # blocksize=8 -> K=4 blocks per image
    input_img = jax.random.uniform(k_in, (N, C, H, W), dtype=jnp.float32)
    target_img = jax.random.uniform(k_tgt, (N, C, H, W), dtype=jnp.float32)

    dist = jax.block_until_ready(watson_distance_fft(input_img, target_img))
    ref = jax.block_until_ready(watson_distance_fft_ref(input_img, target_img))

    assert bool(jnp.isfinite(dist)), dist
    assert bool(jnp.allclose(dist, ref, rtol=2e-2, atol=2e-2)), (dist, ref)
    print("KERNEL_OK")
</pallas_src>

<mosaic_0001>
module attributes {stable_mosaic.version = 11 : i64} {
  func.func @_watson_fft_kernel(%arg0: i32, %arg1: memref<1xf32, #tpu.memory_space<smem>>, %arg2: memref<64x128xf32, #tpu.memory_space<vmem>>, %arg3: memref<64x128xf32, #tpu.memory_space<vmem>>, %arg4: memref<80x64xf32, #tpu.memory_space<vmem>>, %arg5: memref<1x1xf32, #tpu.memory_space<smem>>) attributes {dimension_semantics = [#tpu.dimension_semantics<parallel>], iteration_bounds = array<i64: 1>, scalar_prefetch = 0 : i64, scratch_operands = 0 : i64, tpu.core_type = #tpu.core_type<tc>, window_params = [{transform_indices = @transform_0, window_bounds = array<i64: 1>}, {transform_indices = @transform_1, window_bounds = array<i64: 64, 128>}, {transform_indices = @transform_2, window_bounds = array<i64: 64, 128>}, {pipeline_mode = #tpu.pipeline_mode<synchronous>, transform_indices = @transform_3, window_bounds = array<i64: 80, 64>}, {transform_indices = @transform_4, window_bounds = array<i64: 1, 1>}]} {
    %c0 = arith.constant 0 : index
    %c0_0 = arith.constant 0 : index
    %0 = vector.load %arg4[%c0, %c0_0] : memref<80x64xf32, #tpu.memory_space<vmem>>, vector<80x64xf32>
    %c0_1 = arith.constant 0 : index
    %c0_2 = arith.constant 0 : index
    %1 = vector.load %arg2[%c0_1, %c0_2] : memref<64x128xf32, #tpu.memory_space<vmem>>, vector<64x128xf32>
    %cst = arith.constant dense<0.000000e+00> : vector<80x128xf32>
    %2 = tpu.matmul %0, %1, %cst {dimension_numbers = #tpu.dot_dimension_numbers<[1], [0], [0], [1], [0, 0, 1, 1], [], []>} : vector<80x64xf32>, vector<64x128xf32>, vector<80x128xf32> -> vector<80x128xf32>
    %c0_3 = arith.constant 0 : index
    %c0_4 = arith.constant 0 : index
    %3 = vector.load %arg3[%c0_3, %c0_4] : memref<64x128xf32, #tpu.memory_space<vmem>>, vector<64x128xf32>
    %cst_5 = arith.constant dense<0.000000e+00> : vector<80x128xf32>
    %4 = tpu.matmul %0, %3, %cst_5 {dimension_numbers = #tpu.dot_dimension_numbers<[1], [0], [0], [1], [0, 0, 1, 1], [], []>} : vector<80x64xf32>, vector<64x128xf32>, vector<80x128xf32> -> vector<80x128xf32>
    %5 = vector.extract_strided_slice %2 {offsets = [0, 0], sizes = [40, 128], strides = [1, 1]} : vector<80x128xf32> to vector<40x128xf32>
    %6 = vector.extract_strided_slice %2 {offsets = [40, 0], sizes = [40, 128], strides = [1, 1]} : vector<80x128xf32> to vector<40x128xf32>
    %7 = vector.extract_strided_slice %4 {offsets = [0, 0], sizes = [40, 128], strides = [1, 1]} : vector<80x128xf32> to vector<40x128xf32>
    %8 = vector.extract_strided_slice %4 {offsets = [40, 0], sizes = [40, 128], strides = [1, 1]} : vector<80x128xf32> to vector<40x128xf32>
    %cst_6 = arith.constant 1.000000e-10 : f32
    %9 = vector.broadcast %cst_6 : f32 to vector<40x128xf32>
    %10 = arith.addf %5, %9 : vector<40x128xf32>
    %11 = arith.mulf %10, %10 : vector<40x128xf32>
    %cst_7 = arith.constant 1.000000e-10 : f32
    %12 = vector.broadcast %cst_7 : f32 to vector<40x128xf32>
    %13 = arith.addf %6, %12 : vector<40x128xf32>
    %14 = arith.mulf %13, %13 : vector<40x128xf32>
    %15 = arith.addf %11, %14 : vector<40x128xf32>
    %16 = math.sqrt %15 : vector<40x128xf32>
    %cst_8 = arith.constant 1.000000e-10 : f32
    %17 = vector.broadcast %cst_8 : f32 to vector<40x128xf32>
    %18 = arith.addf %7, %17 : vector<40x128xf32>
    %19 = arith.mulf %18, %18 : vector<40x128xf32>
    %cst_9 = arith.constant 1.000000e-10 : f32
    %20 = vector.broadcast %cst_9 : f32 to vector<40x128xf32>
    %21 = arith.addf %8, %20 : vector<40x128xf32>
    %22 = arith.mulf %21, %21 : vector<40x128xf32>
    %23 = arith.addf %19, %22 : vector<40x128xf32>
    %24 = math.sqrt %23 : vector<40x128xf32>
    %c0_10 = arith.constant 0 : index
    %25 = memref.load %arg1[%c0_10] : memref<1xf32, #tpu.memory_space<smem>>
    %cst_11 = arith.constant 1.000000e-10 : f32
    %26 = vector.broadcast %cst_11 : f32 to vector<40x128xf32>
    %27 = arith.addf %16, %26 : vector<40x128xf32>
    %28 = math.log %27 : vector<40x128xf32>
    %29 = vector.extract_strided_slice %28 {offsets = [0, 0], sizes = [1, 128], strides = [1, 1]} : vector<40x128xf32> to vector<1x128xf32>
    %cst_12 = arith.constant 1.000000e-01 : f32
    %30 = vector.broadcast %cst_12 : f32 to vector<1x128xf32>
    %31 = arith.mulf %30, %29 : vector<1x128xf32>
    %32 = vector.broadcast %25 : f32 to vector<1x128xf32>
    %33 = arith.addf %31, %32 : vector<1x128xf32>
    %34 = math.exp %33 : vector<1x128xf32>
    %cst_13 = arith.constant 8.000000e-01 : f32
    %35 = vector.broadcast %cst_13 : f32 to vector<1x128xf32>
    %36 = arith.mulf %35, %33 : vector<1x128xf32>
    %37 = math.exp %36 : vector<1x128xf32>
    %cst_14 = arith.constant 2.000000e-01 : f32
    %38 = vector.broadcast %cst_14 : f32 to vector<40x128xf32>
    %39 = arith.mulf %38, %28 : vector<40x128xf32>
    %40 = math.exp %39 : vector<40x128xf32>
    %41 = vector.broadcast %37 : vector<1x128xf32> to vector<40x128xf32>
    %42 = arith.mulf %40, %41 : vector<40x128xf32>
    %43 = vector.broadcast %34 : vector<1x128xf32> to vector<40x128xf32>
    %44 = arith.maximumf %43, %42 : vector<40x128xf32>
    %45 = vector.broadcast %34 : vector<1x128xf32> to vector<40x128xf32>
    %46 = arith.minimumf %45, %42 : vector<40x128xf32>
    %47 = arith.subf %46, %44 : vector<40x128xf32>
    %48 = math.exp %47 : vector<40x128xf32>
    %49 = arith.subf %16, %24 : vector<40x128xf32>
    %50 = math.absf %49 : vector<40x128xf32>
    %cst_15 = arith.constant 1.000000e+00 : f32
    %51 = vector.broadcast %cst_15 : f32 to vector<40x128xf32>
    %52 = arith.addf %51, %48 : vector<40x128xf32>
    %53 = arith.mulf %50, %52 : vector<40x128xf32>
    %54 = arith.mulf %46, %48 : vector<40x128xf32>
    %55 = arith.addf %44, %54 : vector<40x128xf32>
    %56 = tpu.reciprocal %55 {approx = true} : vector<40x128xf32> -> vector<40x128xf32>
    %57 = arith.mulf %53, %56 : vector<40x128xf32>
    %cst_16 = arith.constant 2.000000e-10 : f32
    %58 = vector.broadcast %cst_16 : f32 to vector<40x128xf32>
    %59 = arith.addf %57, %58 : vector<40x128xf32>
    %cst_17 = arith.constant 1.000000e-10 : f32
    %60 = vector.broadcast %cst_17 : f32 to vector<40x128xf32>
    %61 = arith.addf %5, %60 : vector<40x128xf32>
    %cst_18 = arith.constant 1.000000e-10 : f32
    %62 = vector.broadcast %cst_18 : f32 to vector<40x128xf32>
    %63 = arith.addf %7, %62 : vector<40x128xf32>
    %64 = arith.mulf %16, %24 : vector<40x128xf32>
    %cst_19 = arith.constant 1.000000e-30 : f32
    %65 = vector.broadcast %cst_19 : f32 to vector<40x128xf32>
    %66 = arith.maximumf %64, %65 : vector<40x128xf32>
    %67 = arith.mulf %61, %63 : vector<40x128xf32>
    %68 = arith.mulf %6, %8 : vector<40x128xf32>
    %69 = arith.addf %67, %68 : vector<40x128xf32>
    %70 = tpu.reciprocal %66 {approx = true} : vector<40x128xf32> -> vector<40x128xf32>
    %71 = arith.mulf %69, %70 : vector<40x128xf32>
    %cst_20 = arith.constant 0.99999988 : f32
    %72 = vector.broadcast %cst_20 : f32 to vector<40x128xf32>
    %73 = arith.mulf %71, %72 : vector<40x128xf32>
    %cst_21 = arith.constant -1.000000e+00 : f32
    %cst_22 = arith.constant 1.000000e+00 : f32
    %74 = vector.broadcast %cst_21 : f32 to vector<40x128xf32>
    %75 = arith.maximumf %74, %73 : vector<40x128xf32>
    %76 = vector.broadcast %cst_22 : f32 to vector<40x128xf32>
    %77 = arith.minimumf %76, %75 : vector<40x128xf32>
    %78 = math.absf %77 : vector<40x128xf32>
    %cst_23 = arith.constant 1.000000e+00 : f32
    %79 = vector.broadcast %cst_23 : f32 to vector<40x128xf32>
    %80 = arith.subf %79, %78 : vector<40x128xf32>
    %81 = math.sqrt %80 : vector<40x128xf32>
    %cst_24 = arith.constant 1.872930e-02 : f32
    %82 = vector.broadcast %cst_24 : f32 to vector<40x128xf32>
    %83 = arith.mulf %82, %78 : vector<40x128xf32>
    %cst_25 = arith.constant 7.426100e-02 : f32
    %84 = vector.broadcast %cst_25 : f32 to vector<40x128xf32>
    %85 = arith.subf %84, %83 : vector<40x128xf32>
    %86 = arith.mulf %78, %85 : vector<40x128xf32>
    %cst_26 = arith.constant -0.212114394 : f32
    %87 = vector.broadcast %cst_26 : f32 to vector<40x128xf32>
    %88 = arith.addf %87, %86 : vector<40x128xf32>
    %89 = arith.mulf %78, %88 : vector<40x128xf32>
    %cst_27 = arith.constant 1.57072878 : f32
    %90 = vector.broadcast %cst_27 : f32 to vector<40x128xf32>
    %91 = arith.addf %90, %89 : vector<40x128xf32>
    %92 = arith.mulf %81, %91 : vector<40x128xf32>
    %cst_28 = arith.constant 0.000000e+00 : f32
    %93 = vector.broadcast %cst_28 : f32 to vector<40x128xf32>
    %94 = arith.cmpf oge, %77, %93 : vector<40x128xf32>
    %cst_29 = arith.constant 3.14159274 : f32
    %95 = vector.broadcast %cst_29 : f32 to vector<40x128xf32>
    %96 = arith.subf %95, %92 : vector<40x128xf32>
    %97 = arith.select %94, %92, %96 : vector<40x128xi1>, vector<40x128xf32>
    %98 = tpu.iota {dimensions = array<i32: 0>} : vector<40x1xi32>
    %c0_i32 = arith.constant 0 : i32
    %99 = vector.broadcast %c0_i32 : i32 to vector<40x1xi32>
    %100 = arith.cmpi eq, %98, %99 : vector<40x1xi32>
    %c4_i32 = arith.constant 4 : i32
    %101 = vector.broadcast %c4_i32 : i32 to vector<40x1xi32>
    %102 = arith.cmpi eq, %98, %101 : vector<40x1xi32>
    %103 = arith.ori %100, %102 : vector<40x1xi1>
    %c20_i32 = arith.constant 20 : i32
    %104 = vector.broadcast %c20_i32 : i32 to vector<40x1xi32>
    %105 = arith.cmpi eq, %98, %104 : vector<40x1xi32>
    %106 = arith.ori %103, %105 : vector<40x1xi1>
    %c24_i32 = arith.constant 24 : i32
    %107 = vector.broadcast %c24_i32 : i32 to vector<40x1xi32>
    %108 = arith.cmpi eq, %98, %107 : vector<40x1xi32>
    %109 = arith.ori %106, %108 : vector<40x1xi1>
    %cst_30 = arith.constant 0.000000e+00 : f32
    %cst_31 = arith.constant 0.135335281 : f32
    %110 = vector.broadcast %cst_30 : f32 to vector<40x1xf32>
    %111 = vector.broadcast %cst_31 : f32 to vector<40x1xf32>
    %112 = arith.select %109, %110, %111 : vector<40x1xi1>, vector<40x1xf32>
    %113 = vector.broadcast %112 : vector<40x1xf32> to vector<40x128xf32>
    %114 = arith.mulf %97, %113 : vector<40x128xf32>
    %115 = arith.addf %59, %114 : vector<40x128xf32>
    %c0_i32_32 = arith.constant 0 : i32
    %116 = arith.cmpi eq, %arg0, %c0_i32_32 : i32
    %117 = arith.extui %116 : i1 to i32
    %c0_i32_33 = arith.constant 0 : i32
    %118 = arith.cmpi ne, %117, %c0_i32_33 : i32
    scf.if %118 {
      %122 = tpu.iota {dimensions = array<i32: 1>} : vector<1x128xi32>
      %c8_i32 = arith.constant 8 : i32
      %123 = vector.broadcast %c8_i32 : i32 to vector<1x128xi32>
      %124 = arith.cmpi slt, %122, %123 : vector<1x128xi32>
      %cst_36 = arith.constant 0.000000e+00 : f32
      %125 = vector.shape_cast %124 : vector<1x128xi1> to vector<1x128xi1>
      %126 = vector.broadcast %125 : vector<1x128xi1> to vector<40x128xi1>
      %127 = vector.broadcast %cst_36 : f32 to vector<40x128xf32>
      %128 = arith.select %126, %115, %127 : vector<40x128xi1>, vector<40x128xf32>
      %129 = vector.shape_cast %128 : vector<40x128xf32> to vector<1x40x128xf32>
      %cst_37 = arith.constant dense<0.000000e+00> : vector<1xf32>
      %130 = vector.multi_reduction <add>, %129, %cst_37 [1, 2] : vector<1x40x128xf32> to vector<1xf32>
      %131 = vector.shape_cast %130 : vector<1xf32> to vector<1x1x1xf32>
      %132 = vector.extract %131[0, 0, 0] : f32 from vector<1x1x1xf32>
      %c0_38 = arith.constant 0 : index
      %c0_39 = arith.constant 0 : index
      %133 = memref.load %arg5[%c0_38, %c0_39] : memref<1x1xf32, #tpu.memory_space<smem>>
      memref.store %132, %arg5[%c0_38, %c0_39] : memref<1x1xf32, #tpu.memory_space<smem>>
    } else {
    }
    %c0_i32_34 = arith.constant 0 : i32
    %119 = arith.cmpi ne, %arg0, %c0_i32_34 : i32
    %120 = arith.extui %119 : i1 to i32
    %c0_i32_35 = arith.constant 0 : i32
    %121 = arith.cmpi ne, %120, %c0_i32_35 : i32
    scf.if %121 {
      %122 = vector.shape_cast %115 : vector<40x128xf32> to vector<1x40x128xf32>
      %cst_36 = arith.constant dense<0.000000e+00> : vector<1xf32>
      %123 = vector.multi_reduction <add>, %122, %cst_36 [1, 2] : vector<1x40x128xf32> to vector<1xf32>
      %124 = vector.shape_cast %123 : vector<1xf32> to vector<1x1x1xf32>
      %125 = vector.extract %124[0, 0, 0] : f32 from vector<1x1x1xf32>
      %c0_37 = arith.constant 0 : index
      %c0_38 = arith.constant 0 : index
      %126 = memref.load %arg5[%c0_37, %c0_38] : memref<1x1xf32, #tpu.memory_space<smem>>
      memref.store %125, %arg5[%c0_37, %c0_38] : memref<1x1xf32, #tpu.memory_space<smem>>
    } else {
    }
    return
  }
  func.func @transform_0(%arg0: i32) -> i32 {
    %c0_i32 = arith.constant 0 : i32
    %c0_i32_0 = arith.constant 0 : i32
    return %c0_i32 : i32
  }
  func.func @transform_1(%arg0: i32) -> (i32, i32) {
    %c0_i32 = arith.constant 0 : i32
    %c0_i32_0 = arith.constant 0 : i32
    return %c0_i32, %arg0 : i32, i32
  }
  func.func @transform_2(%arg0: i32) -> (i32, i32) {
    %c0_i32 = arith.constant 0 : i32
    %c0_i32_0 = arith.constant 0 : i32
    return %c0_i32, %arg0 : i32, i32
  }
  func.func @transform_3(%arg0: i32) -> (i32, i32) {
    %c0_i32 = arith.constant 0 : i32
    %c0_i32_0 = arith.constant 0 : i32
    %c0_i32_1 = arith.constant 0 : i32
    return %c0_i32, %c0_i32_0 : i32, i32
  }
  func.func @transform_4(%arg0: i32) -> (i32, i32) {
    %c0_i32 = arith.constant 0 : i32
    %c0_i32_0 = arith.constant 0 : i32
    return %arg0, %c0_i32 : i32, i32
  }
}

</mosaic_0001>

<llo_original>
// kernel: tpu_custom_call.1
$region0: #{tpu_custom_call.1}
  #allocation0 [shape = 'u32[]', space=smem, size = 0x4, offset = 0x4, fixed_abs, tag = 'smem constant byte address 0x4 - core index']
  #allocation1 [shape = 'u32[144,128]{1,0:T(1,128)}', space=vmem, size = 0x12000, scoped, tag = 'internal scratch']
  #allocation2 [shape = 'f32[1]{0:T(128)S(6)}', space=smem, size = 0x200, scoped, tag = 'scoped memory for tpu_custom_call.1']
  %s0 = inlined_call_operand.<no memory space> [shape: f32[1], index: 0, kind: input, shape index: {}]
  %s1 = inlined_call_operand.vmem [shape: f32[64,128], index: 1, kind: input, shape index: {}]
  %s2 = inlined_call_operand.vmem [shape: f32[64,128], index: 2, kind: input, shape index: {}]
  %s3 = inlined_call_operand.vmem [shape: f32[80,64], index: 3, kind: input, shape index: {}]
  %s4 = inlined_call_operand.hbm [shape: f32[1,1], index: 4, kind: output, shape index: {}]
  %s5 = sld [smem:[#allocation0]]
  $region34: #{tpu_custom_call.1} parent=0
    _
  %s7 = ssub.s32 1, %s5
  %s8 = scalar_select 0, %s7, %s5
  %9 = sst [smem:[#allocation2]] %s0
  $region1: #{tpu_custom_call.1} parent=0
    #allocation3 [shape = 'u8[512]{0}', space=smem, size = 0x200, scoped, tag = 'output window, operand 0, single buffered']
    #allocation4 [shape = 's32[1]{0}', space=sflag, size = 0x4, scoped, tag = 'scoped memory for tpu_custom_call.1']
    %10 = vsyncpa [#allocation4], 0
    // Predicated region
    $region2: #{tpu_custom_call.1} parent=1 // pred_check
      _
    $region3: #{tpu_custom_call.1} parent=1 // pred_check_branch
      %12 = sbr.rel (0) target = $region5
    $region4: #{tpu_custom_call.1} parent=1 // pred_region
      _
    $region5: #{tpu_custom_call.1} parent=1 // pred_fallthru
      _
    // Predicated region
    $region6: #{tpu_custom_call.1} parent=1 // pred_check
      _
    $region7: #{tpu_custom_call.1} parent=1 // pred_check_branch
      %14 = sbr.rel (0) target = $region9
    $region8: #{tpu_custom_call.1} parent=1 // pred_region
      _
    $region9: #{tpu_custom_call.1} parent=1 // pred_fallthru
      _
    // Predicated region
    $region10: #{tpu_custom_call.1} parent=1 // pred_check
      _
    $region11: #{tpu_custom_call.1} parent=1 // pred_check_branch
      %16 = sbr.rel (0) target = $region13
    $region12: #{tpu_custom_call.1} parent=1 // pred_region
      _
    $region13: #{tpu_custom_call.1} parent=1 // pred_fallthru
      _
    // Predicated region
    $region14: #{tpu_custom_call.1} parent=1 // pred_check
      _
    $region15: #{tpu_custom_call.1} parent=1 // pred_check_branch
      %18 = sbr.rel (0) target = $region17
    $region16: #{tpu_custom_call.1} parent=1 // pred_region
      _
    $region17: #{tpu_custom_call.1} parent=1 // pred_fallthru
      _
    %v19 = vld [vmem:[%s3] sm:$0xff]
    %v20 = vld [vmem:[%s3 + $0x8] sm:$0xff]
    %v21 = vld [vmem:[%s3 + $0x10] sm:$0xff]
    %v22 = vld [vmem:[%s3 + $0x18] sm:$0xff]
    %v23 = vld [vmem:[%s3 + $0x20] sm:$0xff]
    %v24 = vld [vmem:[%s3 + $0x28] sm:$0xff]
    %v25 = vld [vmem:[%s3 + $0x30] sm:$0xff]
    %v26 = vld [vmem:[%s3 + $0x38] sm:$0xff]
    %v27 = vld [vmem:[%s3 + $0x40] sm:$0xff]
    %v28 = vld [vmem:[%s3 + $0x48] sm:$0xff]
    %v29 = vld [vmem:[%s1] sm:$0xff]
    %v30 = vld [vmem:[%s1 + $0x8] sm:$0xff]
    %v31 = vld [vmem:[%s1 + $0x10] sm:$0xff]
    %v32 = vld [vmem:[%s1 + $0x18] sm:$0xff]
    %v33 = vld [vmem:[%s1 + $0x20] sm:$0xff]
    %v34 = vld [vmem:[%s1 + $0x28] sm:$0xff]
    %v35 = vld [vmem:[%s1 + $0x30] sm:$0xff]
    %v36 = vld [vmem:[%s1 + $0x38] sm:$0xff]
    %vm37 = vcmask 523264
    %v39 = vsel %vm37, %v19, 0
    %v42 = vsel %vm37, %v20, 0
    %v45 = vsel %vm37, %v21, 0
    %v48 = vsel %vm37, %v22, 0
    %v51 = vsel %vm37, %v23, 0
    %v54 = vsel %vm37, %v24, 0
    %v57 = vsel %vm37, %v25, 0
    %v60 = vsel %vm37, %v26, 0
    %v63 = vsel %vm37, %v27, 0
    %v66 = vsel %vm37, %v28, 0
    %68 = vmatprep.subr.mxu0 0.0
    %69 = vmatpush1.msra.mxu0 0.0
    %70 = vmatprep.subr.mxu0 0.0
    %71 = vmatpush1.msra.mxu0 0.0
    %72 = vmatprep.subr.mxu0 0.0
    %73 = vmatpush1.msra.mxu0 0.0
    %74 = vmatprep.subr.mxu0 0.0
    %75 = vmatpush1.msra.mxu0 0.0
    %76 = vmatprep.subr.mxu0 0.0
    %77 = vmatpush1.msra.mxu0 0.0
    %78 = vmatprep.subr.mxu0 0.0
    %79 = vmatpush1.msra.mxu0 0.0
    %80 = vmatprep.subr.mxu0 0.0
    %81 = vmatpush1.msra.mxu0 0.0
    %82 = vmatprep.subr.mxu0 0.0
    %83 = vmatpush1.msra.mxu0 0.0
    %84 = vmatprep.subr.mxu0 0.0
    %85 = vmatpush1.msra.mxu0 %v36
    %86 = vmatprep.subr.mxu0 0.0
    %87 = vmatpush1.msra.mxu0 %v35
    %88 = vmatprep.subr.mxu0 0.0
    %89 = vmatpush1.msra.mxu0 %v34
    %90 = vmatprep.subr.mxu0 0.0
    %91 = vmatpush1.msra.mxu0 %v33
    %92 = vmatprep.subr.mxu0 0.0
    %93 = vmatpush1.msra.mxu0 %v32
    %94 = vmatprep.subr.mxu0 0.0
    %95 = vmatpush1.msra.mxu0 %v31
    %96 = vmatprep.subr.mxu0 0.0
    %97 = vmatpush1.msra.mxu0 %v30
    %98 = vmatprep.subr.mxu0 0.0
    %99 = vmatpush1.msra.mxu0 %v29
    %100 = vmatprep.subr.mxu0 0.0
    %101 = vmatpush2.msra.mxu0 0.0
    %102 = vmatprep.subr.mxu0 0.0
    %103 = vmatpush2.msra.mxu0 0.0
    %104 = vmatprep.subr.mxu0 0.0
    %105 = vmatpush2.msra.mxu0 0.0
    %106 = vmatprep.subr.mxu0 0.0
    %107 = vmatpush2.msra.mxu0 0.0
    %108 = vmatprep.subr.mxu0 0.0
    %109 = vmatpush2.msra.mxu0 0.0
    %110 = vmatprep.subr.mxu0 0.0
    %111 = vmatpush2.msra.mxu0 0.0
    %112 = vmatprep.subr.mxu0 0.0
    %113 = vmatpush2.msra.mxu0 0.0
    %114 = vmatprep.subr.mxu0 0.0
    %115 = vmatpush2.msra.mxu0 0.0
    %116 = vmatprep.subr.mxu0 0.0
    %117 = vmatpush2.msra.mxu0 0.0
    %118 = vmatprep.subr.mxu0 0.0
    %119 = vmatpush2.msra.mxu0 0.0
    %120 = vmatprep.subr.mxu0 0.0
    %121 = vmatpush2.msra.mxu0 0.0
    %122 = vmatprep.subr.mxu0 0.0
    %123 = vmatpush2.msra.mxu0 0.0
    %124 = vmatprep.subr.mxu0 0.0
    %125 = vmatpush2.msra.mxu0 0.0
    %126 = vmatprep.subr.mxu0 0.0
    %127 = vmatpush2.msra.mxu0 0.0
    %128 = vmatprep.subr.mxu0 0.0
    %129 = vmatpush2.msra.mxu0 0.0
    %130 = vmatprep.subr.mxu0 0.0
    %131 = vmatpush2.msra.mxu0 0.0
    %132 = vmatprep.mubr.f32.mxu0 0.0
    %133 = vmatmul.mubr.f32.gmra.mxu0 %v39
    %v134 = vpop.f32.mrf.mxu0
    %v135 = vadd.f32 0.0, %v134
    %v136 = vpop.f32.mrf.mxu0
    %137 = vmatprep.mubr.f32.mxu0 0.0
    %138 = vmatmul.mubr.f32.gmra.mxu0 %v42
    %v139 = vpop.f32.mrf.mxu0
    %v140 = vadd.f32 0.0, %v139
    %v141 = vpop.f32.mrf.mxu0
    %142 = vmatprep.mubr.f32.mxu0 0.0
    %143 = vmatmul.mubr.f32.gmra.mxu0 %v45
    %v144 = vpop.f32.mrf.mxu0
    %v145 = vadd.f32 0.0, %v144
    %v146 = vpop.f32.mrf.mxu0
    %147 = vmatprep.mubr.f32.mxu0 0.0
    %148 = vmatmul.mubr.f32.gmra.mxu0 %v48
    %v149 = vpop.f32.mrf.mxu0
    %v150 = vadd.f32 0.0, %v149
    %v151 = vpop.f32.mrf.mxu0
    %152 = vmatprep.mubr.f32.mxu0 0.0
    %153 = vmatmul.mubr.f32.gmra.mxu0 %v51
    %v154 = vpop.f32.mrf.mxu0
    %v155 = vadd.f32 0.0, %v154
    %v156 = vpop.f32.mrf.mxu0
    %157 = vmatprep.mubr.f32.mxu0 0.0
    %158 = vmatmul.mubr.f32.gmra.mxu0 %v54
    %v159 = vpop.f32.mrf.mxu0
    %v160 = vadd.f32 0.0, %v159
    %v161 = vpop.f32.mrf.mxu0
    %162 = vmatprep.mubr.f32.mxu0 0.0
    %163 = vmatmul.mubr.f32.gmra.mxu0 %v57
    %v164 = vpop.f32.mrf.mxu0
    %v165 = vadd.f32 0.0, %v164
    %v166 = vpop.f32.mrf.mxu0
    %167 = vmatprep.mubr.f32.mxu0 0.0
    %168 = vmatmul.mubr.f32.gmra.mxu0 %v60
    %v169 = vpop.f32.mrf.mxu0
    %v170 = vadd.f32 0.0, %v169
    %v171 = vpop.f32.mrf.mxu0
    %172 = vmatprep.mubr.f32.mxu0 0.0
    %173 = vmatmul.mubr.f32.gmra.mxu0 %v63
    %v174 = vpop.f32.mrf.mxu0
    %v175 = vadd.f32 0.0, %v174
    %v176 = vpop.f32.mrf.mxu0
    %177 = vmatprep.mubr.f32.mxu0 0.0
    %178 = vmatmul.mubr.f32.gmra.mxu0 %v66
    %v179 = vpop.f32.mrf.mxu0
    %v180 = vadd.f32 0.0, %v179
    %v181 = vpop.f32.mrf.mxu0
    %182 = vdwg.mxu0
    %v183 = vld [vmem:[%s2] sm:$0xff]
    %v184 = vld [vmem:[%s2 + $0x8] sm:$0xff]
    %v185 = vld [vmem:[%s2 + $0x10] sm:$0xff]
    %v186 = vld [vmem:[%s2 + $0x18] sm:$0xff]
    %v187 = vld [vmem:[%s2 + $0x20] sm:$0xff]
    %v188 = vld [vmem:[%s2 + $0x28] sm:$0xff]
    %v189 = vld [vmem:[%s2 + $0x30] sm:$0xff]
    %v190 = vld [vmem:[%s2 + $0x38] sm:$0xff]
    %191 = vmatprep.subr.mxu0 0.0
    %192 = vmatpush1.msra.mxu0 0.0
    %193 = vmatprep.subr.mxu0 0.0
    %194 = vmatpush1.msra.mxu0 0.0
    %195 = vmatprep.subr.mxu0 0.0
    %196 = vmatpush1.msra.mxu0 0.0
    %197 = vmatprep.subr.mxu0 0.0
    %198 = vmatpush1.msra.mxu0 0.0
    %199 = vmatprep.subr.mxu0 0.0
    %200 = vmatpush1.msra.mxu0 0.0
    %201 = vmatprep.subr.mxu0 0.0
    %202 = vmatpush1.msra.mxu0 0.0
    %203 = vmatprep.subr.mxu0 0.0
    %204 = vmatpush1.msra.mxu0 0.0
    %205 = vmatprep.subr.mxu0 0.0
    %206 = vmatpush1.msra.mxu0 0.0
    %207 = vmatprep.subr.mxu0 0.0
    %208 = vmatpush1.msra.mxu0 %v190
    %209 = vmatprep.subr.mxu0 0.0
    %210 = vmatpush1.msra.mxu0 %v189
    %211 = vmatprep.subr.mxu0 0.0
    %212 = vmatpush1.msra.mxu0 %v188
    %213 = vmatprep.subr.mxu0 0.0
    %214 = vmatpush1.msra.mxu0 %v187
    %215 = vmatprep.subr.mxu0 0.0
    %216 = vmatpush1.msra.mxu0 %v186
    %217 = vmatprep.subr.mxu0 0.0
    %218 = vmatpush1.msra.mxu0 %v185
    %219 = vmatprep.subr.mxu0 0.0
    %220 = vmatpush1.msra.mxu0 %v184
    %221 = vmatprep.subr.mxu0 0.0
    %222 = vmatpush1.msra.mxu0 %v183
    %223 = vmatprep.subr.mxu0 0.0
    %224 = vmatpush2.msra.mxu0 0.0
    %225 = vmatprep.subr.mxu0 0.0
    %226 = vmatpush2.msra.mxu0 0.0
    %227 = vmatprep.subr.mxu0 0.0
    %228 = vmatpush2.msra.mxu0 0.0
    %229 = vmatprep.subr.mxu0 0.0
    %230 = vmatpush2.msra.mxu0 0.0
    %231 = vmatprep.subr.mxu0 0.0
    %232 = vmatpush2.msra.mxu0 0.0
    %233 = vmatprep.subr.mxu0 0.0
    %234 = vmatpush2.msra.mxu0 0.0
    %235 = vmatprep.subr.mxu0 0.0
    %236 = vmatpush2.msra.mxu0 0.0
    %237 = vmatprep.subr.mxu0 0.0
    %238 = vmatpush2.msra.mxu0 0.0
    %239 = vmatprep.subr.mxu0 0.0
    %240 = vmatpush2.msra.mxu0 0.0
    %241 = vmatprep.subr.mxu0 0.0
    %242 = vmatpush2.msra.mxu0 0.0
    %243 = vmatprep.subr.mxu0 0.0
    %244 = vmatpush2.msra.mxu0 0.0
    %245 = vmatprep.subr.mxu0 0.0
    %246 = vmatpush2.msra.mxu0 0.0
    %247 = vmatprep.subr.mxu0 0.0
    %248 = vmatpush2.msra.mxu0 0.0
    %249 = vmatprep.subr.mxu0 0.0
    %250 = vmatpush2.msra.mxu0 0.0
    %251 = vmatprep.subr.mxu0 0.0
    %252 = vmatpush2.msra.mxu0 0.0
    %253 = vmatprep.subr.mxu0 0.0
    %254 = vmatpush2.msra.mxu0 0.0
    %255 = vmatprep.mubr.f32.mxu0 0.0
    %256 = vmatmul.mubr.f32.gmra.mxu0 %v39
    %v257 = vpop.f32.mrf.mxu0
    %v258 = vadd.f32 0.0, %v257
    %v259 = vpop.f32.mrf.mxu0
    %260 = vmatprep.mubr.f32.mxu0 0.0
    %261 = vmatmul.mubr.f32.gmra.mxu0 %v42
    %v262 = vpop.f32.mrf.mxu0
    %v263 = vadd.f32 0.0, %v262
    %v264 = vpop.f32.mrf.mxu0
    %265 = vmatprep.mubr.f32.mxu0 0.0
    %266 = vmatmul.mubr.f32.gmra.mxu0 %v45
    %v267 = vpop.f32.mrf.mxu0
    %v268 = vadd.f32 0.0, %v267
    %v269 = vpop.f32.mrf.mxu0
    %270 = vmatprep.mubr.f32.mxu0 0.0
    %271 = vmatmul.mubr.f32.gmra.mxu0 %v48
    %v272 = vpop.f32.mrf.mxu0
    %v273 = vadd.f32 0.0, %v272
    %v274 = vpop.f32.mrf.mxu0
    %275 = vmatprep.mubr.f32.mxu0 0.0
    %276 = vmatmul.mubr.f32.gmra.mxu0 %v51
    %v277 = vpop.f32.mrf.mxu0
    %v278 = vadd.f32 0.0, %v277
    %v279 = vpop.f32.mrf.mxu0
    %280 = vmatprep.mubr.f32.mxu0 0.0
    %281 = vmatmul.mubr.f32.gmra.mxu0 %v54
    %v282 = vpop.f32.mrf.mxu0
    %v283 = vadd.f32 0.0, %v282
    %v284 = vpop.f32.mrf.mxu0
    %285 = vmatprep.mubr.f32.mxu0 0.0
    %286 = vmatmul.mubr.f32.gmra.mxu0 %v57
    %v287 = vpop.f32.mrf.mxu0
    %v288 = vadd.f32 0.0, %v287
    %v289 = vpop.f32.mrf.mxu0
    %290 = vmatprep.mubr.f32.mxu0 0.0
    %291 = vmatmul.mubr.f32.gmra.mxu0 %v60
    %v292 = vpop.f32.mrf.mxu0
    %v293 = vadd.f32 0.0, %v292
    %v294 = vpop.f32.mrf.mxu0
    %295 = vmatprep.mubr.f32.mxu0 0.0
    %296 = vmatmul.mubr.f32.gmra.mxu0 %v63
    %v297 = vpop.f32.mrf.mxu0
    %v298 = vadd.f32 0.0, %v297
    %v299 = vpop.f32.mrf.mxu0
    %300 = vmatprep.mubr.f32.mxu0 0.0
    %301 = vmatmul.mubr.f32.gmra.mxu0 %v66
    %v302 = vpop.f32.mrf.mxu0
    %v303 = vadd.f32 0.0, %v302
    %v304 = vpop.f32.mrf.mxu0
    %305 = vdwg.mxu0
    %v306 = vadd.f32 %v135, 1e-10
    %v307 = vadd.f32 %v140, 1e-10
    %v308 = vadd.f32 %v145, 1e-10
    %v309 = vadd.f32 %v150, 1e-10
    %v310 = vadd.f32 %v155, 1e-10
    %v311 = vmul.f32 %v306, %v306
    %v312 = vmul.f32 %v307, %v307
    %v313 = vmul.f32 %v308, %v308
    %v314 = vmul.f32 %v309, %v309
    %v315 = vmul.f32 %v310, %v310
    %v316 = vadd.f32 %v160, 1e-10
    %v317 = vadd.f32 %v165, 1e-10
    %v318 = vadd.f32 %v170, 1e-10
    %v319 = vadd.f32 %v175, 1e-10
    %v320 = vadd.f32 %v180, 1e-10
    %v321 = vmul.f32 %v316, %v316
    %v322 = vmul.f32 %v317, %v317
    %v323 = vmul.f32 %v318, %v318
    %v324 = vmul.f32 %v319, %v319
    %v325 = vmul.f32 %v320, %v320
    %v326 = vadd.f32 %v311, %v321
    %v327 = vadd.f32 %v312, %v322
    %v328 = vadd.f32 %v313, %v323
    %v329 = vadd.f32 %v314, %v324
    %v330 = vadd.f32 %v315, %v325
    %v331 = vrsqrt.pop %v326
    %v332 = vmul.f32 %v326, %v331
    %vm333 = vcmp.eq.f32.partialorder %v326, inf
    %v334 = vsel %vm333, %v326, %v332
    %vm335 = vcmp.eq.f32.partialorder %v326, 0.0
    %v336 = vand.u32 %v326, 2147483648
    %v337 = vsel %vm335, %v336, %v334
    %v338 = vrsqrt.pop %v327
    %v339 = vmul.f32 %v327, %v338
    %vm340 = vcmp.eq.f32.partialorder %v327, inf
    %v341 = vsel %vm340, %v327, %v339
    %vm342 = vcmp.eq.f32.partialorder %v327, 0.0
    %v343 = vand.u32 %v327, 2147483648
    %v344 = vsel %vm342, %v343, %v341
    %v345 = vrsqrt.pop %v328
    %v346 = vmul.f32 %v328, %v345
    %vm347 = vcmp.eq.f32.partialorder %v328, inf
    %v348 = vsel %vm347, %v328, %v346
    %vm349 = vcmp.eq.f32.partialorder %v328, 0.0
    %v350 = vand.u32 %v328, 2147483648
    %v351 = vsel %vm349, %v350, %v348
    %v352 = vrsqrt.pop %v329
    %v353 = vmul.f32 %v329, %v352
    %vm354 = vcmp.eq.f32.partialorder %v329, inf
    %v355 = vsel %vm354, %v329, %v353
    %vm356 = vcmp.eq.f32.partialorder %v329, 0.0
    %v357 = vand.u32 %v329, 2147483648
    %v358 = vsel %vm356, %v357, %v355
    %v359 = vrsqrt.pop %v330
    %v360 = vmul.f32 %v330, %v359
    %vm361 = vcmp.eq.f32.partialorder %v330, inf
    %v362 = vsel %vm361, %v330, %v360
    %vm363 = vcmp.eq.f32.partialorder %v330, 0.0
    %v364 = vand.u32 %v330, 2147483648
    %v365 = vsel %vm363, %v364, %v362
    %v366 = vadd.f32 %v258, 1e-10
    %v367 = vadd.f32 %v263, 1e-10
    %v368 = vadd.f32 %v268, 1e-10
    %v369 = vadd.f32 %v273, 1e-10
    %v370 = vadd.f32 %v278, 1e-10
    %v371 = vmul.f32 %v366, %v366
    %v372 = vmul.f32 %v367, %v367
    %v373 = vmul.f32 %v368, %v368
    %v374 = vmul.f32 %v369, %v369
    %v375 = vmul.f32 %v370, %v370
    %v376 = vadd.f32 %v283, 1e-10
    %v377 = vadd.f32 %v288, 1e-10
    %v378 = vadd.f32 %v293, 1e-10
    %v379 = vadd.f32 %v298, 1e-10
    %v380 = vadd.f32 %v303, 1e-10
    %v381 = vmul.f32 %v376, %v376
    %v382 = vmul.f32 %v377, %v377
    %v383 = vmul.f32 %v378, %v378
    %v384 = vmul.f32 %v379, %v379
    %v385 = vmul.f32 %v380, %v380
    %v386 = vadd.f32 %v371, %v381
    %v387 = vadd.f32 %v372, %v382
    %v388 = vadd.f32 %v373, %v383
    %v389 = vadd.f32 %v374, %v384
    %v390 = vadd.f32 %v375, %v385
    %v391 = vrsqrt.pop %v386
    %v392 = vmul.f32 %v386, %v391
    %vm393 = vcmp.eq.f32.partialorder %v386, inf
    %v394 = vsel %vm393, %v386, %v392
    %vm395 = vcmp.eq.f32.partialorder %v386, 0.0
    %v396 = vand.u32 %v386, 2147483648
    %v397 = vsel %vm395, %v396, %v394
    %v398 = vrsqrt.pop %v387
    %v399 = vmul.f32 %v387, %v398
    %vm400 = vcmp.eq.f32.partialorder %v387, inf
    %v401 = vsel %vm400, %v387, %v399
    %vm402 = vcmp.eq.f32.partialorder %v387, 0.0
    %v403 = vand.u32 %v387, 2147483648
    %v404 = vsel %vm402, %v403, %v401
    %v405 = vrsqrt.pop %v388
    %v406 = vmul.f32 %v388, %v405
    %vm407 = vcmp.eq.f32.partialorder %v388, inf
    %v408 = vsel %vm407, %v388, %v406
    %vm409 = vcmp.eq.f32.partialorder %v388, 0.0
    %v410 = vand.u32 %v388, 2147483648
    %v411 = vsel %vm409, %v410, %v408
    %v412 = vrsqrt.pop %v389
    %v413 = vmul.f32 %v389, %v412
    %vm414 = vcmp.eq.f32.partialorder %v389, inf
    %v415 = vsel %vm414, %v389, %v413
    %vm416 = vcmp.eq.f32.partialorder %v389, 0.0
    %v417 = vand.u32 %v389, 2147483648
    %v418 = vsel %vm416, %v417, %v415
    %v419 = vrsqrt.pop %v390
    %v420 = vmul.f32 %v390, %v419
    %vm421 = vcmp.eq.f32.partialorder %v390, inf
    %v422 = vsel %vm421, %v390, %v420
    %vm423 = vcmp.eq.f32.partialorder %v390, 0.0
    %v424 = vand.u32 %v390, 2147483648
    %v425 = vsel %vm423, %v424, %v422
    %s426 = sld [smem:[#allocation2]]
    %v427 = vadd.f32 %v337, 1e-10
    %v428 = vadd.f32 %v344, 1e-10
    %v429 = vadd.f32 %v351, 1e-10
    %v430 = vadd.f32 %v358, 1e-10
    %v431 = vadd.f32 %v365, 1e-10
    %v432 = vlog2.pop %v427
    %v433 = vmul.f32 %v432, 0.6931472
    %v434 = vlog2.pop %v428
    %v435 = vmul.f32 %v434, 0.6931472
    %v436 = vlog2.pop %v429
    %v437 = vmul.f32 %v436, 0.6931472
    %v438 = vlog2.pop %v430
    %v439 = vmul.f32 %v438, 0.6931472
    %v440 = vlog2.pop %v431
    %v441 = vmul.f32 %v440, 0.6931472
    %v442 = vmul.f32 %v433, 0.1
    %v443 = vstv %s426
    %v444 = vadd.f32 %v442, %v443
    %v445 = vmul.f32 %v444, 1.442695
    %v446 = vpow.pop %v445
    %v447 = vmul.f32 %v444, 0.8
    %v448 = vmul.f32 %v447, 1.442695
    %v449 = vpow.pop %v448
    %v450 = vmul.f32 %v433, 0.2
    %v451 = vmul.f32 %v435, 0.2
    %v452 = vmul.f32 %v437, 0.2
    %v453 = vmul.f32 %v439, 0.2
    %v454 = vmul.f32 %v441, 0.2
    %v455 = vmul.f32 %v450, 1.442695
    %v456 = vpow.pop %v455
    %v457 = vmul.f32 %v451, 1.442695
    %v458 = vpow.pop %v457
    %v459 = vmul.f32 %v452, 1.442695
    %v460 = vpow.pop %v459
    %v461 = vmul.f32 %v453, 1.442695
    %v462 = vpow.pop %v461
    %v463 = vmul.f32 %v454, 1.442695
    %v464 = vpow.pop %v463
    %v465 = vlaneseq
    %v466 = vshrl.u32 %v465, 7
    %v467 = vsub.s32 0, %v466
    %v468 = vrot.slane %v449, %v467
    %v469 = vmul.f32 %v456, %v468
    %v470 = vmul.f32 %v458, %v468
    %v471 = vmul.f32 %v460, %v468
    %v472 = vmul.f32 %v462, %v468
    %v473 = vmul.f32 %v464, %v468
    %v474 = vlaneseq
    %v475 = vshrl.u32 %v474, 7
    %v476 = vsub.s32 0, %v475
    %v477 = vrot.slane %v446, %v476
    %v478 = vmax.f32 %v477, %v469
    %v479 = vmax.f32 %v477, %v470
    %v480 = vmax.f32 %v477, %v471
    %v481 = vmax.f32 %v477, %v472
    %v482 = vmax.f32 %v477, %v473
    %v483 = vmin.f32 %v477, %v469
    %v484 = vmin.f32 %v477, %v470
    %v485 = vmin.f32 %v477, %v471
    %v486 = vmin.f32 %v477, %v472
    %v487 = vmin.f32 %v477, %v473
    %v488 = vsub.f32 %v483, %v478
    %v489 = vsub.f32 %v484, %v479
    %v490 = vsub.f32 %v485, %v480
    %v491 = vsub.f32 %v486, %v481
    %v492 = vsub.f32 %v487, %v482
    %v493 = vmul.f32 %v488, 1.442695
    %v494 = vpow.pop %v493
    %v495 = vmul.f32 %v489, 1.442695
    %v496 = vpow.pop %v495
    %v497 = vmul.f32 %v490, 1.442695
    %v498 = vpow.pop %v497
    %v499 = vmul.f32 %v491, 1.442695
    %v500 = vpow.pop %v499
    %v501 = vmul.f32 %v492, 1.442695
    %v502 = vpow.pop %v501
    %v503 = vsub.f32 %v337, %v397
    %v504 = vsub.f32 %v344, %v404
    %v505 = vsub.f32 %v351, %v411
    %v506 = vsub.f32 %v358, %v418
    %v507 = vsub.f32 %v365, %v425
    %v508 = vand.u32 2147483647, %v503
    %v509 = vand.u32 2147483647, %v504
    %v510 = vand.u32 2147483647, %v505
    %v511 = vand.u32 2147483647, %v506
    %v512 = vand.u32 2147483647, %v507
    %v513 = vadd.f32 %v494, 1.0
    %v514 = vadd.f32 %v496, 1.0
    %v515 = vadd.f32 %v498, 1.0
    %v516 = vadd.f32 %v500, 1.0
    %v517 = vadd.f32 %v502, 1.0
    %v518 = vmul.f32 %v508, %v513
    %v519 = vmul.f32 %v509, %v514
    %v520 = vmul.f32 %v510, %v515
    %v521 = vmul.f32 %v511, %v516
    %v522 = vmul.f32 %v512, %v517
    %v523 = vmul.f32 %v483, %v494
    %v524 = vmul.f32 %v484, %v496
    %v525 = vmul.f32 %v485, %v498
    %v526 = vmul.f32 %v486, %v500
    %v527 = vmul.f32 %v487, %v502
    %v528 = vadd.f32 %v478, %v523
    %v529 = vadd.f32 %v479, %v524
    %v530 = vadd.f32 %v480, %v525
    %v531 = vadd.f32 %v481, %v526
    %v532 = vadd.f32 %v482, %v527
    %v533 = vrcp.pop %v528
    %v534 = vrcp.pop %v529
    %v535 = vrcp.pop %v530
    %v536 = vrcp.pop %v531
    %v537 = vrcp.pop %v532
    %v538 = vmul.f32 %v518, %v533
    %v539 = vmul.f32 %v519, %v534
    %v540 = vmul.f32 %v520, %v535
    %v541 = vmul.f32 %v521, %v536
    %v542 = vmul.f32 %v522, %v537
    %v543 = vadd.f32 %v538, 2e-10
    %v544 = vadd.f32 %v539, 2e-10
    %v545 = vadd.f32 %v540, 2e-10
    %v546 = vadd.f32 %v541, 2e-10
    %v547 = vadd.f32 %v542, 2e-10
    %v548 = vmul.f32 %v337, %v397
    %v549 = vmul.f32 %v344, %v404
    %v550 = vmul.f32 %v351, %v411
    %v551 = vmul.f32 %v358, %v418
    %v552 = vmul.f32 %v365, %v425
    %v553 = vmax.f32 %v548, 1e-30
    %v554 = vmax.f32 %v549, 1e-30
    %v555 = vmax.f32 %v550, 1e-30
    %v556 = vmax.f32 %v551, 1e-30
    %v557 = vmax.f32 %v552, 1e-30
    %v558 = vmul.f32 %v306, %v366
    %v559 = vmul.f32 %v307, %v367
    %v560 = vmul.f32 %v308, %v368
    %v561 = vmul.f32 %v309, %v369
    %v562 = vmul.f32 %v310, %v370
    %v563 = vmul.f32 %v160, %v283
    %v564 = vmul.f32 %v165, %v288
    %v565 = vmul.f32 %v170, %v293
    %v566 = vmul.f32 %v175, %v298
    %v567 = vmul.f32 %v180, %v303
    %v568 = vadd.f32 %v558, %v563
    %v569 = vadd.f32 %v559, %v564
    %v570 = vadd.f32 %v560, %v565
    %v571 = vadd.f32 %v561, %v566
    %v572 = vadd.f32 %v562, %v567
    %v573 = vrcp.pop %v553
    %v574 = vrcp.pop %v554
    %v575 = vrcp.pop %v555
    %v576 = vrcp.pop %v556
    %v577 = vrcp.pop %v557
    %v578 = vmul.f32 %v568, %v573
    %v579 = vmul.f32 %v569, %v574
    %v580 = vmul.f32 %v570, %v575
    %v581 = vmul.f32 %v571, %v576
    %v582 = vmul.f32 %v572, %v577
    %v583 = vmul.f32 %v578, 0.9999999
    %v584 = vmul.f32 %v579, 0.9999999
    %v585 = vmul.f32 %v580, 0.9999999
    %v586 = vmul.f32 %v581, 0.9999999
    %v587 = vmul.f32 %v582, 0.9999999
    %v588 = vmax.f32 %v583, -1.0
    %v589 = vmax.f32 %v584, -1.0
    %v590 = vmax.f32 %v585, -1.0
    %v591 = vmax.f32 %v586, -1.0
    %v592 = vmax.f32 %v587, -1.0
    %v593 = vmin.f32 %v588, 1.0
    %v594 = vmin.f32 %v589, 1.0
    %v595 = vmin.f32 %v590, 1.0
    %v596 = vmin.f32 %v591, 1.0
    %v597 = vmin.f32 %v592, 1.0
    %v598 = vand.u32 2147483647, %v593
    %v599 = vand.u32 2147483647, %v594
    %v600 = vand.u32 2147483647, %v595
    %v601 = vand.u32 2147483647, %v596
    %v602 = vand.u32 2147483647, %v597
    %v603 = vsub.f32 1.0, %v598
    %v604 = vsub.f32 1.0, %v599
    %v605 = vsub.f32 1.0, %v600
    %v606 = vsub.f32 1.0, %v601
    %v607 = vsub.f32 1.0, %v602
    %v608 = vrsqrt.pop %v603
    %v609 = vmul.f32 %v603, %v608
    %vm610 = vcmp.eq.f32.partialorder %v603, inf
    %v611 = vsel %vm610, %v603, %v609
    %vm612 = vcmp.eq.f32.partialorder %v603, 0.0
    %v613 = vand.u32 %v603, 2147483648
    %v614 = vsel %vm612, %v613, %v611
    %v615 = vrsqrt.pop %v604
    %v616 = vmul.f32 %v604, %v615
    %vm617 = vcmp.eq.f32.partialorder %v604, inf
    %v618 = vsel %vm617, %v604, %v616
    %vm619 = vcmp.eq.f32.partialorder %v604, 0.0
    %v620 = vand.u32 %v604, 2147483648
    %v621 = vsel %vm619, %v620, %v618
    %v622 = vrsqrt.pop %v605
    %v623 = vmul.f32 %v605, %v622
    %vm624 = vcmp.eq.f32.partialorder %v605, inf
    %v625 = vsel %vm624, %v605, %v623
    %vm626 = vcmp.eq.f32.partialorder %v605, 0.0
    %v627 = vand.u32 %v605, 2147483648
    %v628 = vsel %vm626, %v627, %v625
    %v629 = vrsqrt.pop %v606
    %v630 = vmul.f32 %v606, %v629
    %vm631 = vcmp.eq.f32.partialorder %v606, inf
    %v632 = vsel %vm631, %v606, %v630
    %vm633 = vcmp.eq.f32.partialorder %v606, 0.0
    %v634 = vand.u32 %v606, 2147483648
    %v635 = vsel %vm633, %v634, %v632
    %v636 = vrsqrt.pop %v607
    %v637 = vmul.f32 %v607, %v636
    %vm638 = vcmp.eq.f32.partialorder %v607, inf
    %v639 = vsel %vm638, %v607, %v637
    %vm640 = vcmp.eq.f32.partialorder %v607, 0.0
    %v641 = vand.u32 %v607, 2147483648
    %v642 = vsel %vm640, %v641, %v639
    %v643 = vmul.f32 %v598, 0.0187293
    %v644 = vmul.f32 %v599, 0.0187293
    %v645 = vmul.f32 %v600, 0.0187293
    %v646 = vmul.f32 %v601, 0.0187293
    %v647 = vmul.f32 %v602, 0.0187293
    %v648 = vsub.f32 0.074261, %v643
    %v649 = vsub.f32 0.074261, %v644
    %v650 = vsub.f32 0.074261, %v645
    %v651 = vsub.f32 0.074261, %v646
    %v652 = vsub.f32 0.074261, %v647
    %v653 = vmul.f32 %v598, %v648
    %v654 = vmul.f32 %v599, %v649
    %v655 = vmul.f32 %v600, %v650
    %v656 = vmul.f32 %v601, %v651
    %v657 = vmul.f32 %v602, %v652
    %v658 = vadd.f32 %v653, -0.2121144
    %v659 = vadd.f32 %v654, -0.2121144
    %v660 = vadd.f32 %v655, -0.2121144
    %v661 = vadd.f32 %v656, -0.2121144
    %v662 = vadd.f32 %v657, -0.2121144
    %v663 = vmul.f32 %v598, %v658
    %v664 = vmul.f32 %v599, %v659
    %v665 = vmul.f32 %v600, %v660
    %v666 = vmul.f32 %v601, %v661
    %v667 = vmul.f32 %v602, %v662
    %v668 = vadd.f32 %v663, 1.5707288
    %v669 = vadd.f32 %v664, 1.5707288
    %v670 = vadd.f32 %v665, 1.5707288
    %v671 = vadd.f32 %v666, 1.5707288
    %v672 = vadd.f32 %v667, 1.5707288
    %v673 = vmul.f32 %v614, %v668
    %v674 = vmul.f32 %v621, %v669
    %v675 = vmul.f32 %v628, %v670
    %v676 = vmul.f32 %v635, %v671
    %v677 = vmul.f32 %v642, %v672
    %vm678 = vcmp.ge.f32.partialorder %v593, 0.0
    %vm679 = vcmp.ge.f32.partialorder %v594, 0.0
    %vm680 = vcmp.ge.f32.partialorder %v595, 0.0
    %vm681 = vcmp.ge.f32.partialorder %v596, 0.0
    %vm682 = vcmp.ge.f32.partialorder %v597, 0.0
    %v683 = vsub.f32 3.1415927, %v673
    %v684 = vsub.f32 3.1415927, %v674
    %v685 = vsub.f32 3.1415927, %v675
    %v686 = vsub.f32 3.1415927, %v676
    %v687 = vsub.f32 3.1415927, %v677
    %v688 = vsel %vm678, %v673, %v683
    %v689 = vsel %vm679, %v674, %v684
    %v690 = vsel %vm680, %v675, %v685
    %v691 = vsel %vm681, %v676, %v686
    %v692 = vsel %vm682, %v677, %v687
    %v693 = vlaneseq
    %v694 = vshrl.u32 %v693, 7
    %v695 = vadd.s32 %v694, 8
    %v696 = vadd.s32 %v694, 16
    %v697 = vadd.s32 %v694, 24
    %v698 = vadd.s32 %v694, 32
    %vm699 = vcmp.eq.s32.totalorder %v694, 0
    %vm700 = vcmp.eq.s32.totalorder %v695, 0
    %vm701 = vcmp.eq.s32.totalorder %v696, 0
    %vm702 = vcmp.eq.s32.totalorder %v697, 0
    %vm703 = vcmp.eq.s32.totalorder %v698, 0
    %vm704 = vcmp.eq.s32.totalorder %v694, 4
    %vm705 = vcmp.eq.s32.totalorder %v695, 4
    %vm706 = vcmp.eq.s32.totalorder %v696, 4
    %vm707 = vcmp.eq.s32.totalorder %v697, 4
    %vm708 = vcmp.eq.s32.totalorder %v698, 4
    %vm709 = vmor %vm699, %vm704
    %vm710 = vmor %vm700, %vm705
    %vm711 = vmor %vm701, %vm706
    %vm712 = vmor %vm702, %vm707
    %vm713 = vmor %vm703, %vm708
    %vm714 = vcmp.eq.s32.totalorder %v694, 20
    %vm715 = vcmp.eq.s32.totalorder %v695, 20
    %vm716 = vcmp.eq.s32.totalorder %v696, 20
    %vm717 = vcmp.eq.s32.totalorder %v697, 20
    %vm718 = vcmp.eq.s32.totalorder %v698, 20
    %vm719 = vmor %vm709, %vm714
    %vm720 = vmor %vm710, %vm715
    %vm721 = vmor %vm711, %vm716
    %vm722 = vmor %vm712, %vm717
    %vm723 = vmor %vm713, %vm718
    %vm724 = vcmp.eq.s32.totalorder %v694, 24
    %vm725 = vcmp.eq.s32.totalorder %v695, 24
    %vm726 = vcmp.eq.s32.totalorder %v696, 24
    %vm727 = vcmp.eq.s32.totalorder %v697, 24
    %vm728 = vcmp.eq.s32.totalorder %v698, 24
    %vm729 = vmor %vm719, %vm724
    %vm730 = vmor %vm720, %vm725
    %vm731 = vmor %vm721, %vm726
    %vm732 = vmor %vm722, %vm727
    %vm733 = vmor %vm723, %vm728
    %v734 = vsel %vm729, 0.0, 0.13533528
    %v735 = vsel %vm730, 0.0, 0.13533528
    %v736 = vsel %vm731, 0.0, 0.13533528
    %v737 = vsel %vm732, 0.0, 0.13533528
    %v738 = vsel %vm733, 0.0, 0.13533528
    %v739 = vmul.f32 %v688, %v734
    %v740 = vmul.f32 %v689, %v735
    %v741 = vmul.f32 %v690, %v736
    %v742 = vmul.f32 %v691, %v737
    %v743 = vmul.f32 %v692, %v738
    %v744 = vadd.f32 %v543, %v739
    %v745 = vadd.f32 %v544, %v740
    %v746 = vadd.f32 %v545, %v741
    %v747 = vadd.f32 %v546, %v742
    %v748 = vadd.f32 %v547, %v743
    %p749 = scmp.eq.s32.totalorder 0, 0
    // Predicated region
    $region18: #{tpu_custom_call.1} parent=1 // pred_check
      %p750 = pneg %p749
    $region19: #{tpu_custom_call.1} parent=1 // pred_check_branch
      %752 = sbr.rel (%p750) target = $region21
    $region20: #{tpu_custom_call.1} parent=1 // pred_region
      %v753 = vlaneseq
      %v754 = vand.u32 %v753, 127
      %vm755 = vcmp.lt.s32.totalorder %v754, 8
      %v756 = vsel %vm755, 1, 0
      %vm757 = vcmp.eq.s32.totalorder %v756, 1
      %v758 = vsel %vm757, %v744, 0.0
      %v759 = vsel %vm757, %v745, 0.0
      %v760 = vsel %vm757, %v746, 0.0
      %v761 = vsel %vm757, %v747, 0.0
      %v762 = vsel %vm757, %v748, 0.0
      %v763 = vadd.f32 %v758, %v759
      %v764 = vadd.f32 %v763, %v760
      %v765 = vadd.f32 %v764, %v761
      %v766 = vadd.f32 %v765, %v762
      %767 = vadd.xlane.f32.xlu0 %v766
      %v768 = vpop.xlane.xlu0 %767
      %v769 = vrot.slane %v768, 4
      %v770 = vadd.f32 %v768, %v769
      %v771 = vrot.slane %v770, 2
      %v772 = vadd.f32 %v770, %v771
      %v773 = vrot.slane %v772, 1
      %v774 = vadd.f32 %v772, %v773
      %s775 = vtos %v774
      %s776 = scalar_lea.smem [#allocation3], 0
      %777 = sst [smem:[%s776]] %s775
    $region21: #{tpu_custom_call.1} parent=1 // pred_fallthru
      _
    %p778 = scmp.ne.s32.totalorder 0, 0
    // Predicated region
    $region22: #{tpu_custom_call.1} parent=1 // pred_check
      %p779 = pneg %p778
    $region23: #{tpu_custom_call.1} parent=1 // pred_check_branch
      %781 = sbr.rel (%p779) target = $region25
    $region24: #{tpu_custom_call.1} parent=1 // pred_region
      %v782 = vadd.f32 %v744, %v745
      %v783 = vadd.f32 %v782, %v746
      %v784 = vadd.f32 %v783, %v747
      %v785 = vadd.f32 %v784, %v748
      %786 = vadd.xlane.f32.xlu0 %v785
      %v787 = vpop.xlane.xlu0 %786
      %v788 = vrot.slane %v787, 4
      %v789 = vadd.f32 %v787, %v788
      %v790 = vrot.slane %v789, 2
      %v791 = vadd.f32 %v789, %v790
      %v792 = vrot.slane %v791, 1
      %v793 = vadd.f32 %v791, %v792
      %s794 = vtos %v793
      %s795 = scalar_lea.smem [#allocation3], 0
      %796 = sst [smem:[%s795]] %s794
    $region25: #{tpu_custom_call.1} parent=1 // pred_fallthru
      _
    // Predicated region
    $region26: #{tpu_custom_call.1} parent=1 // pred_check
      _
    $region27: #{tpu_custom_call.1} parent=1 // pred_check_branch
      %798 = sbr.rel (0) target = $region29
    $region28: #{tpu_custom_call.1} parent=1 // pred_region
      %s800 = ssub.s32 16, 16
      %801 = vsyncadd [#allocation4], %s800
      %804 = dma.smem_to_hbm [#allocation3], 16, %s4, [#allocation4]
    $region29: #{tpu_custom_call.1} parent=1 // pred_fallthru
      _
    // Predicated region
    $region30: #{tpu_custom_call.1} parent=1 // pred_check
      _
    $region31: #{tpu_custom_call.1} parent=1 // pred_check_branch
      %806 = sbr.rel (0) target = $region33
    $region32: #{tpu_custom_call.1} parent=1 // pred_region
      %807 = dma.done [#allocation4], 16
    $region33: #{tpu_custom_call.1} parent=1 // pred_fallthru
      _
    %808 = sfence
    %809 = vsyncpa [#allocation4], 1

</llo_original>
